<compile_context>
chip_gen: v5e
topology: v5e:2x2
jax: 0.10.0
libtpu: 0.0.40
codegen_flags: <defaults>
</compile_context>

<pallas_src>
import functools

import jax
import jax.numpy as jnp
from jax.experimental import pallas as pl
from jax.experimental.pallas import tpu as pltpu


# ---------------------------------------------------------------------------
# Chip-aware VMEM budget (v5e/v6e: 128 MiB, v7x: 64 MiB per TensorCore).
# ---------------------------------------------------------------------------
def _vmem_capacity_bytes():
    try:
        return int(pltpu.get_tpu_info().vmem_capacity_bytes)
    except Exception:
        return 64 * 1024 * 1024  # conservative default (v7x per-TC)


_VMEM_CAP_BYTES = _vmem_capacity_bytes()
_VMEM_LIMIT_BYTES = min(_VMEM_CAP_BYTES * 3 // 4, 112 * 1024 * 1024)


def _round_up(x, m):
    return (x + m - 1) // m * m


def _auto_row_tile(n):
    """Row tile for the [tm, n_pad] adjacency block.

    Multiple of 16 (native bf16 sublane tiling is (16, 128)); sized so the
    double-buffered bf16 adjacency stream uses at most ~half the VMEM budget,
    leaving the rest for the resident XW/HW2/weight blocks and the output tile.
    """
    n16 = _round_up(max(n, 16), 16)
    cap = 2048 if _VMEM_LIMIT_BYTES >= 80 * 1024 * 1024 else 512
    if n16 <= cap:
        return n16
    tm = (_VMEM_LIMIT_BYTES // 2) // (2 * 2 * n16)  # 2 buffers x 2 B/elt x n16
    return max(16, min(cap, (tm // 16) * 16))


def prepare_adjacency(adj_hat, *, row_tile=None):
    """Pad + cast A_hat to bf16 ONCE per graph (it is constant).

    Returns (adj_p, tm): padded [n_pad, n_pad] bf16 adjacency and the row tile.
    Hoisted out of gcn_forward so the dominant N^2 read/cast/write is not paid
    on every forward call.
    """
    n = adj_hat.shape[0]
    if row_tile is None:
        tm = _auto_row_tile(n)
    else:
        tm = max(16, _round_up(row_tile, 16))
    n_pad = _round_up(max(n, tm), tm)
    adj_p = jnp.zeros((n_pad, n_pad), jnp.bfloat16).at[:n, :n].set(
        adj_hat.astype(jnp.bfloat16))
    return adj_p, tm


# ---------------------------------------------------------------------------
# Kernels
# ---------------------------------------------------------------------------
def _gcn_fused_kernel(adj_ref, xw1_ref, b1_ref, w2_ref, b2_ref,
                      wfc_ref, bfc_ref, out_ref):
    # Whole graph resident in VMEM: A_hat is DMA'd from HBM exactly once and
    # reused for both propagation layers.
    adj = adj_ref[...]
    h1 = jnp.maximum(
        jnp.dot(adj, xw1_ref[...], preferred_element_type=jnp.float32)
        + b1_ref[...], 0.0)
    # Dropout(p=0.4) is identity at inference.
    # TODO(synk): training-mode dropout (pltpu.prng_random_bits mask) not emitted.
    hw2 = jnp.dot(h1.astype(jnp.bfloat16), w2_ref[...],
                  preferred_element_type=jnp.float32)
    h2 = jnp.maximum(
        jnp.dot(adj, hw2.astype(jnp.bfloat16),
                preferred_element_type=jnp.float32) + b2_ref[...], 0.0)
    out_ref[...] = (
        jnp.dot(h2.astype(jnp.bfloat16), wfc_ref[...],
                preferred_element_type=jnp.float32) + bfc_ref[...])


def _prop1_w2_kernel(adj_ref, xw1_ref, b1_ref, w2_ref, hw2_ref):
    # hw2_tile = relu(A_hat_tile @ XW1 + b1) @ W2 : layer-1 propagation fused
    # with the layer-2 feature transform (h1 never round-trips through HBM).
    h1 = jnp.maximum(
        jnp.dot(adj_ref[...], xw1_ref[...], preferred_element_type=jnp.float32)
        + b1_ref[...], 0.0)
    hw2_ref[...] = jnp.dot(h1.astype(jnp.bfloat16), w2_ref[...],
                           preferred_element_type=jnp.float32
                           ).astype(hw2_ref.dtype)


def _prop2_fc_kernel(adj_ref, hw2_ref, b2_ref, wfc_ref, bfc_ref, out_ref):
    # out_tile = relu(A_hat_tile @ HW2 + b2) @ Wfc + bfc (Wfc/bfc lane-padded to
    # 128 output lanes -> lane-dense store; column 0 sliced outside).
    h2 = jnp.maximum(
        jnp.dot(adj_ref[...], hw2_ref[...], preferred_element_type=jnp.float32)
        + b2_ref[...], 0.0)
    out_ref[...] = (
        jnp.dot(h2.astype(jnp.bfloat16), wfc_ref[...],
                preferred_element_type=jnp.float32) + bfc_ref[...])


# ---------------------------------------------------------------------------
# pallas_call wrappers
# ---------------------------------------------------------------------------
def _const_spec(shape, single_buffer):
    # Constant-index (grid-invariant) block: the second pipeline buffer is pure
    # VMEM waste, so request single buffering when supported.
    if single_buffer:
        return pl.BlockSpec(shape, lambda i: (0, 0), pipeline_mode=pl.Buffered(1))
    return pl.BlockSpec(shape, lambda i: (0, 0))


def _gcn_fused(adj_p, xw1_p, b1_p, w2_p, b2_p, wfc_p, bfc_p):
    n_pad, hp = xw1_p.shape
    op = wfc_p.shape[1]
    return pl.pallas_call(
        _gcn_fused_kernel,
        out_shape=jax.ShapeDtypeStruct((n_pad, op), jnp.float32),
        compiler_params=pltpu.CompilerParams(
            vmem_limit_bytes=_VMEM_LIMIT_BYTES),
        cost_estimate=pl.CostEstimate(
            flops=4 * n_pad * n_pad * hp + 2 * n_pad * hp * (hp + op),
            transcendentals=0,
            bytes_accessed=(adj_p.size * 2 + xw1_p.size * 2 + w2_p.size * 2
                            + wfc_p.size * 2 + n_pad * op * 4)),
    )(adj_p, xw1_p, b1_p, w2_p, b2_p, wfc_p, bfc_p)


def _prop1_w2(adj_p, xw1_p, b1_p, w2_p, tm, single_buffer):
    n_pad, hp = xw1_p.shape
    return pl.pallas_call(
        _prop1_w2_kernel,
        out_shape=jax.ShapeDtypeStruct((n_pad, hp), jnp.bfloat16),
        grid=(n_pad // tm,),
        in_specs=[
            pl.BlockSpec((tm, n_pad), lambda i: (i, 0)),   # streamed A_hat rows
            _const_spec((n_pad, hp), single_buffer),       # resident XW1
            _const_spec((1, hp), single_buffer),           # b1
            _const_spec((hp, hp), single_buffer),          # W2
        ],
        out_specs=pl.BlockSpec((tm, hp), lambda i: (i, 0)),
        compiler_params=pltpu.CompilerParams(
            dimension_semantics=("parallel",),
            vmem_limit_bytes=_VMEM_LIMIT_BYTES),
        cost_estimate=pl.CostEstimate(
            flops=2 * n_pad * n_pad * hp + 2 * n_pad * hp * hp,
            transcendentals=0,
            bytes_accessed=(adj_p.size * 2 + xw1_p.size * 2 + w2_p.size * 2
                            + n_pad * hp * 2)),
    )(adj_p, xw1_p, b1_p, w2_p)


def _prop2_fc(adj_p, hw2_p, b2_p, wfc_p, bfc_p, tm, single_buffer):
    n_pad, hp = hw2_p.shape
    op = wfc_p.shape[1]
    return pl.pallas_call(
        _prop2_fc_kernel,
        out_shape=jax.ShapeDtypeStruct((n_pad, op), jnp.float32),
        grid=(n_pad // tm,),
        in_specs=[
            pl.BlockSpec((tm, n_pad), lambda i: (i, 0)),   # streamed A_hat rows
            _const_spec((n_pad, hp), single_buffer),       # resident HW2
            _const_spec((1, hp), single_buffer),           # b2
            _const_spec((hp, op), single_buffer),          # Wfc (lane-padded)
            _const_spec((1, op), single_buffer),           # bfc (lane-padded)
        ],
        out_specs=pl.BlockSpec((tm, op), lambda i: (i, 0)),
        compiler_params=pltpu.CompilerParams(
            dimension_semantics=("parallel",),
            vmem_limit_bytes=_VMEM_LIMIT_BYTES),
        cost_estimate=pl.CostEstimate(
            flops=2 * n_pad * n_pad * hp + 2 * n_pad * hp * op,
            transcendentals=0,
            bytes_accessed=(adj_p.size * 2 + hw2_p.size * 2 + wfc_p.size * 2
                            + n_pad * op * 4)),
    )(adj_p, hw2_p, b2_p, wfc_p, bfc_p)


# ---------------------------------------------------------------------------
# Full forward pass
# ---------------------------------------------------------------------------
@functools.partial(jax.jit,
                   static_argnames=("n", "tm", "force_tiled", "single_buffer"))
def gcn_forward(adj_p, x, w1, b1, w2, b2, wfc, bfc, *,
                n, tm, force_tiled=False, single_buffer=True):
    """adj_p is the pre-padded bf16 A_hat from prepare_adjacency (constant per
    graph); n is the number of valid (unpadded) nodes."""
    n_pad = adj_p.shape[0]
    hidden = w1.shape[1]
    out_dim = wfc.shape[1]
    hp = _round_up(max(hidden, 128), 128)   # hidden padded to MXU/lane width
    op = _round_up(max(out_dim, 128), 128)  # lane-dense output padding

    # X @ W1 is a tiny K=input_dim matmul: let XLA do it in f32 and pad/cast
    # once (no dedicated pallas_call / no MXU K-underutilization).
    xw1 = jnp.dot(x.astype(jnp.float32), w1.astype(jnp.float32))
    xw1_p = jnp.zeros((n_pad, hp), jnp.bfloat16).at[:n, :hidden].set(
        xw1.astype(jnp.bfloat16))

    w2_p = jnp.zeros((hp, hp), jnp.bfloat16).at[:hidden, :hidden].set(
        w2.astype(jnp.bfloat16))
    wfc_p = jnp.zeros((hp, op), jnp.bfloat16).at[:hidden, :out_dim].set(
        wfc.astype(jnp.bfloat16))
    b1_p = jnp.zeros((1, hp), jnp.float32).at[:, :hidden].set(
        b1.reshape(1, -1).astype(jnp.float32))
    b2_p = jnp.zeros((1, hp), jnp.float32).at[:, :hidden].set(
        b2.reshape(1, -1).astype(jnp.float32))
    bfc_p = jnp.zeros((1, op), jnp.float32).at[:, :out_dim].set(
        bfc.reshape(1, -1).astype(jnp.float32))
    # NOTE: padded rows of h1 equal relu(b1) but never contaminate valid outputs
    # because padded adjacency columns are zero.

    # Rough VMEM footprint of the fully fused call (adjacency + f32 temps +
    # resident operands + output).  If it fits the budget, stream A_hat once.
    fused_bytes = (n_pad * n_pad * 2
                   + 4 * n_pad * hp * 4
                   + n_pad * op * 4
                   + hp * (hp + op) * 2)
    use_fused = (not force_tiled) and fused_bytes <= _VMEM_LIMIT_BYTES * 7 // 10

    if use_fused:
        out_p = _gcn_fused(adj_p, xw1_p, b1_p, w2_p, b2_p, wfc_p, bfc_p)
    else:
        hw2_p = _prop1_w2(adj_p, xw1_p, b1_p, w2_p, tm, single_buffer)
        out_p = _prop2_fc(adj_p, hw2_p, b2_p, wfc_p, bfc_p, tm, single_buffer)

    return out_p[:n, :out_dim]


# ---------------------------------------------------------------------------
# Plain-JAX glue: symmetric-normalized dense adjacency from edge_index
# (matches torch_geometric GCNConv gcn_norm with add_self_loops=True).
# ---------------------------------------------------------------------------
def gcn_norm_dense_adj(edge_index, num_nodes):
    src = edge_index[0]
    dst = edge_index[1]
    loop = jnp.arange(num_nodes, dtype=edge_index.dtype)
    src = jnp.concatenate([src, loop])
    dst = jnp.concatenate([dst, loop])
    adj = jnp.zeros((num_nodes, num_nodes), jnp.float32).at[dst, src].add(1.0)
    deg = jnp.zeros((num_nodes,), jnp.float32).at[dst].add(1.0)
    dinv = jax.lax.rsqrt(jnp.maximum(deg, 1e-12))
    return dinv[:, None] * adj * dinv[None, :]


# ---------------------------------------------------------------------------
# Deterministic parameter init (shapes from the module __init__)
# ---------------------------------------------------------------------------
def init_params(key, input_dim, hidden_dim, output_dim):
    k1, k2, k3 = jax.random.split(key, 3)

    def glorot(k, fan_in, fan_out):
        limit = jnp.sqrt(6.0 / (fan_in + fan_out))
        return jax.random.uniform(k, (fan_in, fan_out), jnp.float32,
                                  minval=-limit, maxval=limit)

    w1 = glorot(k1, input_dim, hidden_dim)
    b1 = jnp.zeros((1, hidden_dim), jnp.float32)
    w2 = glorot(k2, hidden_dim, hidden_dim)
    b2 = jnp.zeros((1, hidden_dim), jnp.float32)
    wfc = glorot(k3, hidden_dim, output_dim)
    bfc = jnp.zeros((1, output_dim), jnp.float32)
    return w1, b1, w2, b2, wfc, bfc


if __name__ == "__main__":
    key = jax.random.PRNGKey(0)
    k_edge_u, k_edge_m, k_genre, k_params = jax.random.split(key, 4)

    # Small synthetic "MovieLens-like" graph
    num_users = 12
    num_movies = 12
    num_nodes = num_users + num_movies          # N = 24
    input_dim = 8                               # genre feature dim
    hidden_dim = 64
    output_dim = 1
    num_edges = 40

    users = jax.random.randint(k_edge_u, (num_edges,), 0, num_users)
    movies = jax.random.randint(k_edge_m, (num_edges,), 0, num_movies) + num_users
    edge_index = jnp.stack([users, movies]).astype(jnp.int32)   # [2, E]

    genre_features = (jax.random.bernoulli(k_genre, 0.3, (num_movies, input_dim))
                      .astype(jnp.float32))
    user_features = jnp.zeros((num_users, input_dim), jnp.float32)
    node_features = jnp.concatenate([user_features, genre_features], axis=0)

    adj_hat = gcn_norm_dense_adj(edge_index, num_nodes)          # [N, N] f32
    # Hoisted once-per-graph pad/cast; row_tile=16 so the tiled path exercises a
    # multi-step grid at N=24 (n_pad=32, 2 row tiles).
    adj_p, tm = prepare_adjacency(adj_hat, row_tile=16)
    params = init_params(k_params, input_dim, hidden_dim, output_dim)

    # Path 1: fused single-call (A_hat streamed from HBM exactly once).
    out_fused = jax.block_until_ready(
        gcn_forward(adj_p, node_features, *params, n=num_nodes, tm=tm))

    # Path 2: row-tiled two-call pipeline (what large graphs use).  Falls back
    # to default double-buffered resident blocks if this jax build rejects
    # pl.Buffered(1) on grid-invariant BlockSpecs.
    def _run_tiled(single_buffer):
        return jax.block_until_ready(
            gcn_forward(adj_p, node_features, *params, n=num_nodes, tm=tm,
                        force_tiled=True, single_buffer=single_buffer))

    try:
        out_tiled = _run_tiled(True)
    except Exception:
        out_tiled = _run_tiled(False)

    # Plain-JAX f32 reference of the same forward semantics.
    w1, b1, w2, b2, wfc, bfc = params
    h1_ref = jnp.maximum(adj_hat @ (node_features @ w1) + b1, 0.0)
    h2_ref = jnp.maximum(adj_hat @ (h1_ref @ w2) + b2, 0.0)
    ref = h2_ref @ wfc + bfc

    for out in (out_fused, out_tiled):
        assert out.shape == (num_nodes, output_dim)
        assert jnp.all(jnp.isfinite(out))
        rel_err = jnp.max(jnp.abs(out - ref)) / (jnp.max(jnp.abs(ref)) + 1e-6)
        assert rel_err < 5e-2, f"kernel/reference mismatch: rel_err={rel_err}"

    print("KERNEL_OK")
</pallas_src>

<mosaic_0001>
module attributes {stable_mosaic.version = 11 : i64} {
  func.func @_gcn_fused_kernel(%arg0: memref<32x32xbf16, #tpu.memory_space<vmem>>, %arg1: memref<32x128xbf16, #tpu.memory_space<vmem>>, %arg2: memref<1x128xf32, #tpu.memory_space<vmem>>, %arg3: memref<128x128xbf16, #tpu.memory_space<vmem>>, %arg4: memref<1x128xf32, #tpu.memory_space<vmem>>, %arg5: memref<128x128xbf16, #tpu.memory_space<vmem>>, %arg6: memref<1x128xf32, #tpu.memory_space<vmem>>, %arg7: memref<32x128xf32, #tpu.memory_space<vmem>>) attributes {dimension_semantics = [], scalar_prefetch = 0 : i64, scratch_operands = 0 : i64, tpu.core_type = #tpu.core_type<tc>} {
    %c0 = arith.constant 0 : index
    %c0_0 = arith.constant 0 : index
    %0 = vector.load %arg0[%c0, %c0_0] : memref<32x32xbf16, #tpu.memory_space<vmem>>, vector<32x32xbf16>
    %c0_1 = arith.constant 0 : index
    %c0_2 = arith.constant 0 : index
    %1 = vector.load %arg1[%c0_1, %c0_2] : memref<32x128xbf16, #tpu.memory_space<vmem>>, vector<32x128xbf16>
    %cst = arith.constant dense<0.000000e+00> : vector<32x128xf32>
    %2 = tpu.matmul %0, %1, %cst {dimension_numbers = #tpu.dot_dimension_numbers<[1], [0], [0], [1], [0, 0, 1, 1], [], []>} : vector<32x32xbf16>, vector<32x128xbf16>, vector<32x128xf32> -> vector<32x128xf32>
    %c0_3 = arith.constant 0 : index
    %c0_4 = arith.constant 0 : index
    %3 = vector.load %arg2[%c0_3, %c0_4] : memref<1x128xf32, #tpu.memory_space<vmem>>, vector<1x128xf32>
    %4 = vector.broadcast %3 : vector<1x128xf32> to vector<32x128xf32>
    %5 = arith.addf %2, %4 : vector<32x128xf32>
    %cst_5 = arith.constant 0.000000e+00 : f32
    %6 = vector.broadcast %cst_5 : f32 to vector<32x128xf32>
    %7 = arith.maximumf %5, %6 : vector<32x128xf32>
    %8 = arith.truncf %7 : vector<32x128xf32> to vector<32x128xbf16>
    %c0_6 = arith.constant 0 : index
    %c0_7 = arith.constant 0 : index
    %9 = vector.load %arg3[%c0_6, %c0_7] : memref<128x128xbf16, #tpu.memory_space<vmem>>, vector<128x128xbf16>
    %cst_8 = arith.constant dense<0.000000e+00> : vector<32x128xf32>
    %10 = tpu.matmul %8, %9, %cst_8 {dimension_numbers = #tpu.dot_dimension_numbers<[1], [0], [0], [1], [0, 0, 1, 1], [], []>} : vector<32x128xbf16>, vector<128x128xbf16>, vector<32x128xf32> -> vector<32x128xf32>
    %11 = arith.truncf %10 : vector<32x128xf32> to vector<32x128xbf16>
    %cst_9 = arith.constant dense<0.000000e+00> : vector<32x128xf32>
    %12 = tpu.matmul %0, %11, %cst_9 {dimension_numbers = #tpu.dot_dimension_numbers<[1], [0], [0], [1], [0, 0, 1, 1], [], []>} : vector<32x32xbf16>, vector<32x128xbf16>, vector<32x128xf32> -> vector<32x128xf32>
    %c0_10 = arith.constant 0 : index
    %c0_11 = arith.constant 0 : index
    %13 = vector.load %arg4[%c0_10, %c0_11] : memref<1x128xf32, #tpu.memory_space<vmem>>, vector<1x128xf32>
    %14 = vector.broadcast %13 : vector<1x128xf32> to vector<32x128xf32>
    %15 = arith.addf %12, %14 : vector<32x128xf32>
    %cst_12 = arith.constant 0.000000e+00 : f32
    %16 = vector.broadcast %cst_12 : f32 to vector<32x128xf32>
    %17 = arith.maximumf %15, %16 : vector<32x128xf32>
    %18 = arith.truncf %17 : vector<32x128xf32> to vector<32x128xbf16>
    %c0_13 = arith.constant 0 : index
    %c0_14 = arith.constant 0 : index
    %19 = vector.load %arg5[%c0_13, %c0_14] : memref<128x128xbf16, #tpu.memory_space<vmem>>, vector<128x128xbf16>
    %cst_15 = arith.constant dense<0.000000e+00> : vector<32x128xf32>
    %20 = tpu.matmul %18, %19, %cst_15 {dimension_numbers = #tpu.dot_dimension_numbers<[1], [0], [0], [1], [0, 0, 1, 1], [], []>} : vector<32x128xbf16>, vector<128x128xbf16>, vector<32x128xf32> -> vector<32x128xf32>
    %c0_16 = arith.constant 0 : index
    %c0_17 = arith.constant 0 : index
    %21 = vector.load %arg6[%c0_16, %c0_17] : memref<1x128xf32, #tpu.memory_space<vmem>>, vector<1x128xf32>
    %22 = vector.broadcast %21 : vector<1x128xf32> to vector<32x128xf32>
    %23 = arith.addf %20, %22 : vector<32x128xf32>
    %c0_18 = arith.constant 0 : index
    %c0_19 = arith.constant 0 : index
    %24 = vector.load %arg7[%c0_18, %c0_19] : memref<32x128xf32, #tpu.memory_space<vmem>>, vector<32x128xf32>
    tpu.vector_store %arg7[%c0_18, %c0_19], %23 {strides = array<i32>} : memref<32x128xf32, #tpu.memory_space<vmem>>, vector<32x128xf32>,
    return
  }
}

</mosaic_0001>

<llo_original>
// kernel: gcn_forward.1
$region0: #{gcn_forward.1}
  #allocation0 [shape = 'u32[]', space=smem, size = 0x4, offset = 0x4, fixed_abs, tag = 'smem constant byte address 0x4 - core index']
  #allocation1 [shape = 'u32[72,128]{1,0:T(1,128)}', space=vmem, size = 0x9000, scoped, tag = 'internal scratch']
  %s0 = inlined_call_operand.vmem [shape: bf16[32,32], index: 0, kind: input, shape index: {}]
  %s1 = inlined_call_operand.vmem [shape: bf16[32,128], index: 1, kind: input, shape index: {}]
  %s2 = inlined_call_operand.vmem [shape: f32[1,128], index: 2, kind: input, shape index: {}]
  %s3 = inlined_call_operand.vmem [shape: bf16[128,128], index: 3, kind: input, shape index: {}]
  %s4 = inlined_call_operand.vmem [shape: f32[1,128], index: 4, kind: input, shape index: {}]
  %s5 = inlined_call_operand.vmem [shape: bf16[128,128], index: 5, kind: input, shape index: {}]
  %s6 = inlined_call_operand.vmem [shape: f32[1,128], index: 6, kind: input, shape index: {}]
  %s7 = inlined_call_operand.vmem [shape: f32[32,128], index: 7, kind: output, shape index: {}]
  %s8 = sld [smem:[#allocation0]]
  $region38: #{gcn_forward.1} parent=0
    _
  %s10 = ssub.s32 1, %s8
  %s11 = scalar_select 0, %s10, %s8
  // Predicated region
  $region2: #{gcn_forward.1} parent=0 // pred_check
    _
  $region3: #{gcn_forward.1} parent=0 // pred_check_branch
    %13 = sbr.rel (0) target = $region5
  $region4: #{gcn_forward.1} parent=0 // pred_region
    _
  $region5: #{gcn_forward.1} parent=0 // pred_fallthru
    _
  // Predicated region
  $region6: #{gcn_forward.1} parent=0 // pred_check
    _
  $region7: #{gcn_forward.1} parent=0 // pred_check_branch
    %15 = sbr.rel (0) target = $region9
  $region8: #{gcn_forward.1} parent=0 // pred_region
    _
  $region9: #{gcn_forward.1} parent=0 // pred_fallthru
    _
  // Predicated region
  $region10: #{gcn_forward.1} parent=0 // pred_check
    _
  $region11: #{gcn_forward.1} parent=0 // pred_check_branch
    %17 = sbr.rel (0) target = $region13
  $region12: #{gcn_forward.1} parent=0 // pred_region
    _
  $region13: #{gcn_forward.1} parent=0 // pred_fallthru
    _
  // Predicated region
  $region14: #{gcn_forward.1} parent=0 // pred_check
    _
  $region15: #{gcn_forward.1} parent=0 // pred_check_branch
    %19 = sbr.rel (0) target = $region17
  $region16: #{gcn_forward.1} parent=0 // pred_region
    _
  $region17: #{gcn_forward.1} parent=0 // pred_fallthru
    _
  // Predicated region
  $region18: #{gcn_forward.1} parent=0 // pred_check
    _
  $region19: #{gcn_forward.1} parent=0 // pred_check_branch
    %21 = sbr.rel (0) target = $region21
  $region20: #{gcn_forward.1} parent=0 // pred_region
    _
  $region21: #{gcn_forward.1} parent=0 // pred_fallthru
    _
  // Predicated region
  $region22: #{gcn_forward.1} parent=0 // pred_check
    _
  $region23: #{gcn_forward.1} parent=0 // pred_check_branch
    %23 = sbr.rel (0) target = $region25
  $region24: #{gcn_forward.1} parent=0 // pred_region
    _
  $region25: #{gcn_forward.1} parent=0 // pred_fallthru
    _
  // Predicated region
  $region26: #{gcn_forward.1} parent=0 // pred_check
    _
  $region27: #{gcn_forward.1} parent=0 // pred_check_branch
    %25 = sbr.rel (0) target = $region29
  $region28: #{gcn_forward.1} parent=0 // pred_region
    _
  $region29: #{gcn_forward.1} parent=0 // pred_fallthru
    _
  %v27 = vld [vmem:[%s0] sm:$0xf]
  %v28 = vld [vmem:[%s0 + $0x4] sm:$0xf]
  %v29 = vld [vmem:[%s0 + $0x8] sm:$0xf]
  %v30 = vld [vmem:[%s0 + $0xc] sm:$0xf]
  %v31 = vld [vmem:[%s1] sm:$0xf]
  %v32 = vld [vmem:[%s1 + $0x4] sm:$0xf]
  %v33 = vld [vmem:[%s1 + $0x8] sm:$0xf]
  %v34 = vld [vmem:[%s1 + $0xc] sm:$0xf]
  %v35 = vld [vmem:[%s2] sm:$0x1]
  %v37 = vperm.slane %v35, 0
  %v43 = vunpack.c.l.b16 %v27
  %v44 = vunpack.c.l.b16 %v28
  %v45 = vunpack.c.l.b16 %v29
  %v46 = vunpack.c.l.b16 %v30
  %v47 = vpack.c.b16 %v44, %v43
  %v48 = vpack.c.b16 %v46, %v45
  %v53 = vunpack.c.l.b16 %v31
  %v54 = vunpack.c.l.b16 %v32
  %v55 = vunpack.c.l.b16 %v33
  %v56 = vunpack.c.l.b16 %v34
  %v57 = vpack.c.b16 %v54, %v53
  %v58 = vpack.c.b16 %v56, %v55
  %vm61 = vcmask 261120
  %v63 = vsel %vm61, %v47, 0
  %v66 = vsel %vm61, %v48, 0
  %68 = vmatpush.bf16.msra.mxu0 0
  %69 = vmatpush.bf16.msra.mxu0 0
  %70 = vmatpush.bf16.msra.mxu0 0
  %71 = vmatpush.bf16.msra.mxu0 0
  %72 = vmatpush.bf16.msra.mxu0 0
  %73 = vmatpush.bf16.msra.mxu0 0
  %74 = vmatpush.bf16.msra.mxu0 %v58
  %75 = vmatpush.bf16.msra.mxu0 %v57
  %76 = vmatmul.bf16.gmra.mxu0 %v63
  %v77 = vpop.f32.mrf.mxu0
  %v78 = vadd.f32 %v37, %v77
  %v79 = vpop.f32.mrf.mxu0
  %v80 = vadd.f32 %v37, %v79
  %81 = vmatmul.bf16.gmra.mxu0 %v66
  %v82 = vpop.f32.mrf.mxu0
  %v83 = vadd.f32 %v37, %v82
  %v84 = vpop.f32.mrf.mxu0
  %v85 = vadd.f32 %v37, %v84
  %86 = vdwg.mxu0
  %v87 = vmax.f32 %v78, 0.0
  %v88 = vmax.f32 %v80, 0.0
  %v89 = vmax.f32 %v83, 0.0
  %v90 = vmax.f32 %v85, 0.0
  %v91 = vpack.c.bf16 %v88, %v87
  %v92 = vpack.c.bf16 %v90, %v89
  %v93 = vld [vmem:[%s3] sm:$0xf]
  %v94 = vld [vmem:[%s3 + $0x4] sm:$0xf]
  %v95 = vld [vmem:[%s3 + $0x8] sm:$0xf]
  %v96 = vld [vmem:[%s3 + $0xc] sm:$0xf]
  %v97 = vld [vmem:[%s3 + $0x10] sm:$0xf]
  %v98 = vld [vmem:[%s3 + $0x14] sm:$0xf]
  %v99 = vld [vmem:[%s3 + $0x18] sm:$0xf]
  %v100 = vld [vmem:[%s3 + $0x1c] sm:$0xf]
  %v101 = vld [vmem:[%s3 + $0x20] sm:$0xf]
  %v102 = vld [vmem:[%s3 + $0x24] sm:$0xf]
  %v103 = vld [vmem:[%s3 + $0x28] sm:$0xf]
  %v104 = vld [vmem:[%s3 + $0x2c] sm:$0xf]
  %v105 = vld [vmem:[%s3 + $0x30] sm:$0xf]
  %v106 = vld [vmem:[%s3 + $0x34] sm:$0xf]
  %v107 = vld [vmem:[%s3 + $0x38] sm:$0xf]
  %v108 = vld [vmem:[%s3 + $0x3c] sm:$0xf]
  %v125 = vunpack.c.l.b16 %v93
  %v126 = vunpack.c.l.b16 %v94
  %v127 = vunpack.c.l.b16 %v95
  %v128 = vunpack.c.l.b16 %v96
  %v129 = vunpack.c.l.b16 %v97
  %v130 = vunpack.c.l.b16 %v98
  %v131 = vunpack.c.l.b16 %v99
  %v132 = vunpack.c.l.b16 %v100
  %v133 = vunpack.c.l.b16 %v101
  %v134 = vunpack.c.l.b16 %v102
  %v135 = vunpack.c.l.b16 %v103
  %v136 = vunpack.c.l.b16 %v104
  %v137 = vunpack.c.l.b16 %v105
  %v138 = vunpack.c.l.b16 %v106
  %v139 = vunpack.c.l.b16 %v107
  %v140 = vunpack.c.l.b16 %v108
  %v141 = vpack.c.b16 %v126, %v125
  %v142 = vpack.c.b16 %v128, %v127
  %v143 = vpack.c.b16 %v130, %v129
  %v144 = vpack.c.b16 %v132, %v131
  %v145 = vpack.c.b16 %v134, %v133
  %v146 = vpack.c.b16 %v136, %v135
  %v147 = vpack.c.b16 %v138, %v137
  %v148 = vpack.c.b16 %v140, %v139
  %157 = vmatpush.bf16.msra.mxu0 %v148
  %158 = vmatpush.bf16.msra.mxu0 %v147
  %159 = vmatpush.bf16.msra.mxu0 %v146
  %160 = vmatpush.bf16.msra.mxu0 %v145
  %161 = vmatpush.bf16.msra.mxu0 %v144
  %162 = vmatpush.bf16.msra.mxu0 %v143
  %163 = vmatpush.bf16.msra.mxu0 %v142
  %164 = vmatpush.bf16.msra.mxu0 %v141
  %165 = vmatmul.bf16.gmra.mxu0 %v91
  %v166 = vpop.f32.mrf.mxu0
  %v167 = vadd.f32 0.0, %v166
  %v168 = vpop.f32.mrf.mxu0
  %v169 = vadd.f32 0.0, %v168
  %170 = vmatmul.bf16.gmra.mxu0 %v92
  %v171 = vpop.f32.mrf.mxu0
  %v172 = vadd.f32 0.0, %v171
  %v173 = vpop.f32.mrf.mxu0
  %v174 = vadd.f32 0.0, %v173
  %175 = vdwg.mxu0
  %v176 = vpack.c.bf16 %v169, %v167
  %v177 = vpack.c.bf16 %v174, %v172
  %v178 = vld [vmem:[%s4] sm:$0x1]
  %v180 = vperm.slane %v178, 0
  %182 = vmatpush.bf16.msra.mxu0 0
  %183 = vmatpush.bf16.msra.mxu0 0
  %184 = vmatpush.bf16.msra.mxu0 0
  %185 = vmatpush.bf16.msra.mxu0 0
  %186 = vmatpush.bf16.msra.mxu0 0
  %187 = vmatpush.bf16.msra.mxu0 0
  %188 = vmatpush.bf16.msra.mxu0 %v177
  %189 = vmatpush.bf16.msra.mxu0 %v176
  %190 = vmatmul.bf16.gmra.mxu0 %v63
  %v191 = vpop.f32.mrf.mxu0
  %v192 = vadd.f32 %v180, %v191
  %v193 = vpop.f32.mrf.mxu0
  %v194 = vadd.f32 %v180, %v193
  %195 = vmatmul.bf16.gmra.mxu0 %v66
  %v196 = vpop.f32.mrf.mxu0
  %v197 = vadd.f32 %v180, %v196
  %v198 = vpop.f32.mrf.mxu0
  %v199 = vadd.f32 %v180, %v198
  %200 = vdwg.mxu0
  %v201 = vmax.f32 %v192, 0.0
  %v202 = vmax.f32 %v194, 0.0
  %v203 = vmax.f32 %v197, 0.0
  %v204 = vmax.f32 %v199, 0.0
  %v205 = vpack.c.bf16 %v202, %v201
  %v206 = vpack.c.bf16 %v204, %v203
  %v207 = vld [vmem:[%s5] sm:$0xf]
  %v208 = vld [vmem:[%s5 + $0x4] sm:$0xf]
  %v209 = vld [vmem:[%s5 + $0x8] sm:$0xf]
  %v210 = vld [vmem:[%s5 + $0xc] sm:$0xf]
  %v211 = vld [vmem:[%s5 + $0x10] sm:$0xf]
  %v212 = vld [vmem:[%s5 + $0x14] sm:$0xf]
  %v213 = vld [vmem:[%s5 + $0x18] sm:$0xf]
  %v214 = vld [vmem:[%s5 + $0x1c] sm:$0xf]
  %v215 = vld [vmem:[%s5 + $0x20] sm:$0xf]
  %v216 = vld [vmem:[%s5 + $0x24] sm:$0xf]
  %v217 = vld [vmem:[%s5 + $0x28] sm:$0xf]
  %v218 = vld [vmem:[%s5 + $0x2c] sm:$0xf]
  %v219 = vld [vmem:[%s5 + $0x30] sm:$0xf]
  %v220 = vld [vmem:[%s5 + $0x34] sm:$0xf]
  %v221 = vld [vmem:[%s5 + $0x38] sm:$0xf]
  %v222 = vld [vmem:[%s5 + $0x3c] sm:$0xf]
  %v223 = vld [vmem:[%s6] sm:$0x1]
  %v225 = vperm.slane %v223, 0
  %v243 = vunpack.c.l.b16 %v207
  %v244 = vunpack.c.l.b16 %v208
  %v245 = vunpack.c.l.b16 %v209
  %v246 = vunpack.c.l.b16 %v210
  %v247 = vunpack.c.l.b16 %v211
  %v248 = vunpack.c.l.b16 %v212
  %v249 = vunpack.c.l.b16 %v213
  %v250 = vunpack.c.l.b16 %v214
  %v251 = vunpack.c.l.b16 %v215
  %v252 = vunpack.c.l.b16 %v216
  %v253 = vunpack.c.l.b16 %v217
  %v254 = vunpack.c.l.b16 %v218
  %v255 = vunpack.c.l.b16 %v219
  %v256 = vunpack.c.l.b16 %v220
  %v257 = vunpack.c.l.b16 %v221
  %v258 = vunpack.c.l.b16 %v222
  %v259 = vpack.c.b16 %v244, %v243
  %v260 = vpack.c.b16 %v246, %v245
  %v261 = vpack.c.b16 %v248, %v247
  %v262 = vpack.c.b16 %v250, %v249
  %v263 = vpack.c.b16 %v252, %v251
  %v264 = vpack.c.b16 %v254, %v253
  %v265 = vpack.c.b16 %v256, %v255
  %v266 = vpack.c.b16 %v258, %v257
  %275 = vmatpush.bf16.msra.mxu0 %v266
  %276 = vmatpush.bf16.msra.mxu0 %v265
  %277 = vmatpush.bf16.msra.mxu0 %v264
  %278 = vmatpush.bf16.msra.mxu0 %v263
  %279 = vmatpush.bf16.msra.mxu0 %v262
  %280 = vmatpush.bf16.msra.mxu0 %v261
  %281 = vmatpush.bf16.msra.mxu0 %v260
  %282 = vmatpush.bf16.msra.mxu0 %v259
  %283 = vmatmul.bf16.gmra.mxu0 %v205
  %v284 = vpop.f32.mrf.mxu0
  %v285 = vadd.f32 %v225, %v284
  %v286 = vpop.f32.mrf.mxu0
  %v287 = vadd.f32 %v225, %v286
  %288 = vmatmul.bf16.gmra.mxu0 %v206
  %v289 = vpop.f32.mrf.mxu0
  %v290 = vadd.f32 %v225, %v289
  %v291 = vpop.f32.mrf.mxu0
  %v292 = vadd.f32 %v225, %v291
  %293 = vdwg.mxu0
  %294 = vst [vmem:[%s7] sm:$0xff] %v285
  %295 = vst [vmem:[%s7 + $0x8] sm:$0xff] %v287
  %296 = vst [vmem:[%s7 + $0x10] sm:$0xff] %v290
  %297 = vst [vmem:[%s7 + $0x18] sm:$0xff] %v292
  // Predicated region
  $region30: #{gcn_forward.1} parent=0 // pred_check
    _
  $region31: #{gcn_forward.1} parent=0 // pred_check_branch
    %299 = sbr.rel (0) target = $region33
  $region32: #{gcn_forward.1} parent=0 // pred_region
    _
  $region33: #{gcn_forward.1} parent=0 // pred_fallthru
    _
  // Predicated region
  $region34: #{gcn_forward.1} parent=0 // pred_check
    _
  $region35: #{gcn_forward.1} parent=0 // pred_check_branch
    %301 = sbr.rel (0) target = $region37
  $region36: #{gcn_forward.1} parent=0 // pred_region
    _
  $region37: #{gcn_forward.1} parent=0 // pred_fallthru
    _

</llo_original>
